<compile_context>
chip_gen: v6e
topology: v6e:2x2x1
jax: 0.10.0
libtpu: 0.0.40
codegen_flags: <defaults>
</compile_context>

<pallas_src>
import functools

import jax
import jax.numpy as jnp
from jax.experimental import pallas as pl
from jax.experimental.pallas import tpu as pltpu


def _round_up(x, m):
    return ((x + m - 1) // m) * m


def notears_mlp_kernel(x_ref, w_ref, o_ref):
    # y = x @ W + x   (== x @ (I + W)); bf16 operands on the MXU, f32 accum.
    x = x_ref[...]
    y = jnp.dot(x, w_ref[...], preferred_element_type=jnp.float32)
    y = y + x.astype(jnp.float32)
    # sigmoid(y) = 1 / (1 + exp(-y)): exp and the approximate reciprocal both
    # go to the EUP; only the add/cast touch the VPU.
    e = jnp.exp(-y)
    o_ref[...] = pl.reciprocal(1.0 + e, approx=True).astype(o_ref.dtype)


def prepare_weight(w):
    """One-time weight prep: zero-pad feature axes to 128 lanes and cast bf16.

    Hoisted out of the per-call path so repeated forwards don't re-read and
    re-write W in HBM just to pad/cast it.
    """
    dims = w.shape[0]
    assert w.shape == (dims, dims)
    d_pad = _round_up(dims, 128)
    w_p = jnp.pad(w, ((0, d_pad - dims), (0, d_pad - dims)))
    return w_p.astype(jnp.bfloat16)


def _w_block_spec(d_pad):
    kwargs = {}
    if hasattr(pl, "Buffered"):
        # Constant index_map -> W is fetched once; don't allocate a 2nd buffer.
        kwargs["pipeline_mode"] = pl.Buffered(1)
    return pl.BlockSpec((d_pad, d_pad), lambda i: (0, 0), **kwargs)


@functools.partial(jax.jit, static_argnames=("block_m",))
def notears_mlp_forward(x, w_prepared, *, block_m=512):
    """sigmoid(x @ (I + W)) with W pre-padded/cast by prepare_weight()."""
    batch, dims = x.shape
    d_pad = w_prepared.shape[0]
    assert w_prepared.shape == (d_pad, d_pad)
    assert d_pad == _round_up(dims, 128)

    # Batch (sublane) tiling: as large as block_m allows, but keep >= 2 grid
    # steps when the batch permits so the "parallel" axis feeds both v7x TCs.
    b8 = _round_up(batch, 8)
    m_tile = min(block_m, b8)
    if b8 >= 16:
        m_tile = min(m_tile, _round_up((b8 + 1) // 2, 8))
    m_pad = _round_up(batch, m_tile)
    grid_m = m_pad // m_tile

    # Lane-dense, zero-padded x tile in bf16 (zero padding is exact for xW+x).
    # TODO(synk): in a training loop, keep x/out in this padded layout across
    # calls instead of padding + slicing every forward.
    x_p = jnp.pad(x, ((0, m_pad - batch), (0, d_pad - dims))).astype(jnp.bfloat16)

    # VMEM budget: single-buffered bf16 W + double-buffered x (bf16) / out
    # tiles, with 1.5x headroom; never below 32 MiB, capped at 100 MiB.
    out_dtype = x.dtype
    w_bytes = d_pad * d_pad * 2
    io_bytes = m_tile * d_pad * (2 + jnp.dtype(out_dtype).itemsize)
    needed = w_bytes + 2 * io_bytes
    vmem_limit = int(min(100 * 2**20, max(32 * 2**20, needed * 3 // 2)))

    out_p = pl.pallas_call(
        notears_mlp_kernel,
        out_shape=jax.ShapeDtypeStruct((m_pad, d_pad), out_dtype),
        grid=(grid_m,),
        in_specs=[
            # x: one batch tile per grid step (bf16).
            pl.BlockSpec((m_tile, d_pad), lambda i: (i, 0)),
            # W: same (full) block every step -> resident in VMEM, 1 buffer.
            _w_block_spec(d_pad),
        ],
        out_specs=pl.BlockSpec((m_tile, d_pad), lambda i: (i, 0)),
        compiler_params=pltpu.CompilerParams(
            dimension_semantics=("parallel",),  # shard batch tiles across TCs
            vmem_limit_bytes=vmem_limit,
        ),
    )(x_p, w_prepared)

    return out_p[:batch, :dims]


def _reference_f32(x, w):
    dims = w.shape[0]
    return jax.nn.sigmoid(x @ (jnp.eye(dims, dtype=w.dtype) + w))


def _reference_bf16(x, w):
    # Same operand rounding as the kernel (bf16 inputs, f32 accumulate).
    xb = x.astype(jnp.bfloat16).astype(jnp.float32)
    wb = w.astype(jnp.bfloat16).astype(jnp.float32)
    return jax.nn.sigmoid(xb @ wb + xb)


if __name__ == "__main__":
    key = jax.random.PRNGKey(0)
    k_w, k_x, k_w2, k_x2 = jax.random.split(key, 4)

    # Small shapes consistent with the module (single matmul-per-sample MLP).
    dims, batch = 32, 8
    W = jax.random.normal(k_w, (dims, dims), dtype=jnp.float32) * 0.8
    x = jax.random.normal(k_x, (batch, dims), dtype=jnp.float32)

    W_prep = prepare_weight(W)  # pad + bf16 cast once, reused across calls
    out = jax.block_until_ready(notears_mlp_forward(x, W_prep))
    assert out.shape == (batch, dims)
    assert jnp.allclose(out, _reference_bf16(x, W), atol=1e-2, rtol=1e-2)
    assert jnp.allclose(out, _reference_f32(x, W), atol=1e-1)

    # Second check: non-aligned, multi-tile shapes exercising padding and a
    # >= 2-step (megacore-shardable) batch grid.
    dims2, batch2 = 200, 300
    W2 = jax.random.normal(k_w2, (dims2, dims2), dtype=jnp.float32) * 0.8
    x2 = jax.random.normal(k_x2, (batch2, dims2), dtype=jnp.float32)

    W2_prep = prepare_weight(W2)
    out2 = jax.block_until_ready(notears_mlp_forward(x2, W2_prep))
    assert out2.shape == (batch2, dims2)
    assert jnp.allclose(out2, _reference_bf16(x2, W2), atol=1e-2, rtol=1e-2)
    assert jnp.allclose(out2, _reference_f32(x2, W2), atol=1e-1)

    print("KERNEL_OK")
</pallas_src>

<mosaic_0001>
module attributes {stable_mosaic.version = 11 : i64} {
  func.func @notears_mlp_kernel(%arg0: i32, %arg1: memref<8x128xbf16, #tpu.memory_space<vmem>>, %arg2: memref<128x128xbf16, #tpu.memory_space<vmem>>, %arg3: memref<8x128xf32, #tpu.memory_space<vmem>>) attributes {dimension_semantics = [#tpu.dimension_semantics<parallel>], iteration_bounds = array<i64: 1>, scalar_prefetch = 0 : i64, scratch_operands = 0 : i64, tpu.core_type = #tpu.core_type<tc>, window_params = [{transform_indices = @transform_0, window_bounds = array<i64: 8, 128>}, {pipeline_mode = #tpu.pipeline_mode<synchronous>, transform_indices = @transform_1, window_bounds = array<i64: 128, 128>}, {transform_indices = @transform_2, window_bounds = array<i64: 8, 128>}]} {
    %c0 = arith.constant 0 : index
    %c0_0 = arith.constant 0 : index
    %0 = vector.load %arg1[%c0, %c0_0] : memref<8x128xbf16, #tpu.memory_space<vmem>>, vector<8x128xbf16>
    %c0_1 = arith.constant 0 : index
    %c0_2 = arith.constant 0 : index
    %1 = vector.load %arg2[%c0_1, %c0_2] : memref<128x128xbf16, #tpu.memory_space<vmem>>, vector<128x128xbf16>
    %cst = arith.constant dense<0.000000e+00> : vector<8x128xf32>
    %2 = tpu.matmul %0, %1, %cst {dimension_numbers = #tpu.dot_dimension_numbers<[1], [0], [0], [1], [0, 0, 1, 1], [], []>} : vector<8x128xbf16>, vector<128x128xbf16>, vector<8x128xf32> -> vector<8x128xf32>
    %3 = arith.extf %0 : vector<8x128xbf16> to vector<8x128xf32>
    %4 = arith.addf %2, %3 : vector<8x128xf32>
    %cst_3 = arith.constant 0.000000e+00 : f32
    %5 = vector.broadcast %cst_3 : f32 to vector<8x128xf32>
    %6 = arith.subf %5, %4 : vector<8x128xf32>
    %7 = math.exp %6 : vector<8x128xf32>
    %cst_4 = arith.constant 1.000000e+00 : f32
    %8 = vector.broadcast %cst_4 : f32 to vector<8x128xf32>
    %9 = arith.addf %8, %7 : vector<8x128xf32>
    %10 = tpu.reciprocal %9 {approx = true} : vector<8x128xf32> -> vector<8x128xf32>
    %c0_5 = arith.constant 0 : index
    %c0_6 = arith.constant 0 : index
    %11 = vector.load %arg3[%c0_5, %c0_6] : memref<8x128xf32, #tpu.memory_space<vmem>>, vector<8x128xf32>
    tpu.vector_store %arg3[%c0_5, %c0_6], %10 {strides = array<i32>} : memref<8x128xf32, #tpu.memory_space<vmem>>, vector<8x128xf32>,
    return
  }
  func.func @transform_0(%arg0: i32) -> (i32, i32) {
    %c0_i32 = arith.constant 0 : i32
    %c0_i32_0 = arith.constant 0 : i32
    return %arg0, %c0_i32 : i32, i32
  }
  func.func @transform_1(%arg0: i32) -> (i32, i32) {
    %c0_i32 = arith.constant 0 : i32
    %c0_i32_0 = arith.constant 0 : i32
    %c0_i32_1 = arith.constant 0 : i32
    return %c0_i32, %c0_i32_0 : i32, i32
  }
  func.func @transform_2(%arg0: i32) -> (i32, i32) {
    %c0_i32 = arith.constant 0 : i32
    %c0_i32_0 = arith.constant 0 : i32
    return %arg0, %c0_i32 : i32, i32
  }
}

</mosaic_0001>

<llo_original>
// kernel: notears_mlp_forward.1
$region0: #{notears_mlp_forward.1}
  #allocation0 [shape = 'u32[]', space=smem, size = 0x4, offset = 0x4, fixed_abs, tag = 'smem constant byte address 0x4 - core index']
  #allocation1 [shape = 'u32[144,128]{1,0:T(1,128)}', space=vmem, size = 0x12000, scoped, tag = 'internal scratch']
  %s0 = inlined_call_operand.vmem [shape: bf16[8,128], index: 0, kind: input, shape index: {}]
  %s1 = inlined_call_operand.hbm [shape: bf16[128,128], index: 1, kind: input, shape index: {}]
  %s2 = inlined_call_operand.hbm [shape: f32[8,128], index: 2, kind: output, shape index: {}]
  %s3 = sld [smem:[#allocation0]]
  $region22: #{notears_mlp_forward.1} parent=0
    _
  %s5 = ssub.s32 1, %s3
  %s6 = scalar_select 0, %s5, %s3
  $region1: #{notears_mlp_forward.1} parent=0
    #allocation2 [shape = 'u8[32768]{0}', space=vmem, size = 0x8000, scoped, tag = 'input window, operand 1, single buffered']
    #allocation3 [shape = 's32[1]{0}', space=sflag, size = 0x4, scoped, tag = 'scoped memory for notears_mlp_forward.1']
    #allocation4 [shape = 's32[1]{0}', space=sflag, size = 0x4, scoped, tag = 'scoped memory for notears_mlp_forward.1']
    #allocation5 [shape = 'u8[4096]{0}', space=vmem, size = 0x1000, scoped, tag = 'output window, operand 0, single buffered']
    %7 = vsyncpa [#allocation3], 0
    %8 = vsyncpa [#allocation4], 0
    // Predicated region
    $region2: #{notears_mlp_forward.1} parent=1 // pred_check
      _
    $region3: #{notears_mlp_forward.1} parent=1 // pred_check_branch
      %10 = sbr.rel (0) target = $region5
    $region4: #{notears_mlp_forward.1} parent=1 // pred_region
      _
    $region5: #{notears_mlp_forward.1} parent=1 // pred_fallthru
      _
    // Predicated region
    $region6: #{notears_mlp_forward.1} parent=1 // pred_check
      _
    $region7: #{notears_mlp_forward.1} parent=1 // pred_check_branch
      %12 = sbr.rel (0) target = $region9
    $region8: #{notears_mlp_forward.1} parent=1 // pred_region
      %s14 = ssub.s32 1024, 1024
      %15 = vsyncadd [#allocation3], %s14
      %s16 = sshll.u32 [#allocation2], 4
      %s17 = int_to_ptr.vmem [resolvable:$true] %s16
      %22 = dma.hbm_to_vmem [thread:$0]  %s1, 1024, %s17, [#allocation3], 64, 64, 4
    $region9: #{notears_mlp_forward.1} parent=1 // pred_fallthru
      _
    // Predicated region
    $region10: #{notears_mlp_forward.1} parent=1 // pred_check
      _
    $region11: #{notears_mlp_forward.1} parent=1 // pred_check_branch
      %24 = sbr.rel (0) target = $region13
    $region12: #{notears_mlp_forward.1} parent=1 // pred_region
      %25 = dma.done [#allocation3], 1024
    $region13: #{notears_mlp_forward.1} parent=1 // pred_fallthru
      _
    %v27 = vld [vmem:[%s0] sm:$0xf]
    %v28 = vld [vmem:[#allocation2] sm:$0xf]
    %v29 = vld [vmem:[#allocation2 + $0x4] sm:$0xf]
    %v30 = vld [vmem:[#allocation2 + $0x8] sm:$0xf]
    %v31 = vld [vmem:[#allocation2 + $0xc] sm:$0xf]
    %v32 = vld [vmem:[#allocation2 + $0x10] sm:$0xf]
    %v33 = vld [vmem:[#allocation2 + $0x14] sm:$0xf]
    %v34 = vld [vmem:[#allocation2 + $0x18] sm:$0xf]
    %v35 = vld [vmem:[#allocation2 + $0x1c] sm:$0xf]
    %v36 = vld [vmem:[#allocation2 + $0x20] sm:$0xf]
    %v37 = vld [vmem:[#allocation2 + $0x24] sm:$0xf]
    %v38 = vld [vmem:[#allocation2 + $0x28] sm:$0xf]
    %v39 = vld [vmem:[#allocation2 + $0x2c] sm:$0xf]
    %v40 = vld [vmem:[#allocation2 + $0x30] sm:$0xf]
    %v41 = vld [vmem:[#allocation2 + $0x34] sm:$0xf]
    %v42 = vld [vmem:[#allocation2 + $0x38] sm:$0xf]
    %v43 = vld [vmem:[#allocation2 + $0x3c] sm:$0xf]
    %v44 = vunpack.c.l.bf16 %v27
    %v61 = vunpack.c.l.b16 %v28
    %v62 = vunpack.c.l.b16 %v29
    %v63 = vunpack.c.l.b16 %v30
    %v64 = vunpack.c.l.b16 %v31
    %v65 = vunpack.c.l.b16 %v32
    %v66 = vunpack.c.l.b16 %v33
    %v67 = vunpack.c.l.b16 %v34
    %v68 = vunpack.c.l.b16 %v35
    %v69 = vunpack.c.l.b16 %v36
    %v70 = vunpack.c.l.b16 %v37
    %v71 = vunpack.c.l.b16 %v38
    %v72 = vunpack.c.l.b16 %v39
    %v73 = vunpack.c.l.b16 %v40
    %v74 = vunpack.c.l.b16 %v41
    %v75 = vunpack.c.l.b16 %v42
    %v76 = vunpack.c.l.b16 %v43
    %v77 = vpack.c.b16 %v62, %v61
    %v78 = vpack.c.b16 %v64, %v63
    %v79 = vpack.c.b16 %v66, %v65
    %v80 = vpack.c.b16 %v68, %v67
    %v81 = vpack.c.b16 %v70, %v69
    %v82 = vpack.c.b16 %v72, %v71
    %v83 = vpack.c.b16 %v74, %v73
    %v84 = vpack.c.b16 %v76, %v75
    %93 = vmatprep.subr.bf16.mxu0 0
    %94 = vmatpush1.bf16.msra.mxu0 %v84
    %95 = vmatprep.subr.bf16.mxu0 0
    %96 = vmatpush1.bf16.msra.mxu0 %v83
    %97 = vmatprep.subr.bf16.mxu0 0
    %98 = vmatpush1.bf16.msra.mxu0 %v82
    %99 = vmatprep.subr.bf16.mxu0 0
    %100 = vmatpush1.bf16.msra.mxu0 %v81
    %101 = vmatprep.subr.bf16.mxu0 0
    %102 = vmatpush1.bf16.msra.mxu0 %v80
    %103 = vmatprep.subr.bf16.mxu0 0
    %104 = vmatpush1.bf16.msra.mxu0 %v79
    %105 = vmatprep.subr.bf16.mxu0 0
    %106 = vmatpush1.bf16.msra.mxu0 %v78
    %107 = vmatprep.subr.bf16.mxu0 0
    %108 = vmatpush1.bf16.msra.mxu0 %v77
    %109 = vmatprep.subr.bf16.mxu0 0
    %110 = vmatpush2.bf16.msra.mxu0 0
    %111 = vmatprep.subr.bf16.mxu0 0
    %112 = vmatpush2.bf16.msra.mxu0 0
    %113 = vmatprep.subr.bf16.mxu0 0
    %114 = vmatpush2.bf16.msra.mxu0 0
    %115 = vmatprep.subr.bf16.mxu0 0
    %116 = vmatpush2.bf16.msra.mxu0 0
    %117 = vmatprep.subr.bf16.mxu0 0
    %118 = vmatpush2.bf16.msra.mxu0 0
    %119 = vmatprep.subr.bf16.mxu0 0
    %120 = vmatpush2.bf16.msra.mxu0 0
    %121 = vmatprep.subr.bf16.mxu0 0
    %122 = vmatpush2.bf16.msra.mxu0 0
    %123 = vmatprep.subr.bf16.mxu0 0
    %124 = vmatpush2.bf16.msra.mxu0 0
    %125 = vmatprep.mubr.bf16.mxu0 0
    %126 = vmatmul.mubr.bf16.gmra.mxu0 %v27
    %v127 = vpop.f32.mrf.mxu0
    %v128 = vadd.f32 %v44, %v127
    %v129 = vpop.f32.mrf.mxu0
    %v130 = vpop.f32.mrf.mxu0
    %v131 = vpop.f32.mrf.mxu0
    %132 = vdwg.mxu0
    %v133 = vsub.f32 0.0, %v128
    %v134 = vmul.f32 %v133, 1.442695
    %v135 = vpow.pop %v134
    %v136 = vadd.f32 %v135, 1.0
    %v137 = vrcp.pop %v136
    %138 = vst [vmem:[#allocation5] sm:$0xff] %v137
    // Predicated region
    $region14: #{notears_mlp_forward.1} parent=1 // pred_check
      _
    $region15: #{notears_mlp_forward.1} parent=1 // pred_check_branch
      %140 = sbr.rel (0) target = $region17
    $region16: #{notears_mlp_forward.1} parent=1 // pred_region
      %s142 = ssub.s32 128, 128
      %143 = vsyncadd [#allocation4], %s142
      %s145 = sshll.u32 [#allocation5], 4
      %s146 = int_to_ptr.vmem [resolvable:$true] %s145
      %148 = dma.vmem_to_hbm [thread:$0]  %s146, 128, %s2, [#allocation4]
    $region17: #{notears_mlp_forward.1} parent=1 // pred_fallthru
      _
    // Predicated region
    $region18: #{notears_mlp_forward.1} parent=1 // pred_check
      _
    $region19: #{notears_mlp_forward.1} parent=1 // pred_check_branch
      %150 = sbr.rel (0) target = $region21
    $region20: #{notears_mlp_forward.1} parent=1 // pred_region
      %151 = dma.done [#allocation4], 128
    $region21: #{notears_mlp_forward.1} parent=1 // pred_fallthru
      _
    %152 = vsyncpa [#allocation3], 1
    %153 = vsyncpa [#allocation4], 1

</llo_original>
